<compile_context>
chip_gen: v5e
topology: v5e:2x2
jax: 0.10.0
libtpu: 0.0.40
codegen_flags: <defaults>
</compile_context>

<pallas_src>
import functools

import jax
import jax.numpy as jnp
from jax.experimental import pallas as pl
from jax.experimental.pallas import tpu as pltpu


# ------------------------------ hyper-parameters ------------------------------
class HP:
    ref_enc_gru_size = 128        # d_q  (== token_embedding_size // 2)
    token_num = 10                # Tk
    token_embedding_size = 256    # U  (num_units)
    num_heads = 8                 # H  -> d_k = u = 32


VMEM_SPEC = pl.BlockSpec(memory_space=pltpu.MemorySpace.VMEM)


# -------------------------------- Pallas kernel --------------------------------
def stl_fused_kernel(x_ref, wscore_ref, rhs_ref, o_ref, *, num_units):
    """Fused STL forward for all heads at once.

    x:      [n, d_q]        reference-encoder output (the query), f32
    wscore: [d_q, 128]      Wq @ blockdiag(K_h) / sqrt(d_k), zero-padded 80->128, bf16
    rhs:    [128, 2U]       [ blockdiag(V_h) | per-head segment-sum ones ], bf16
    o:      [n, U]          style embedding (torch shape is [N, 1, U]), f32
    """
    # Scores for every (head, token): one lane-dense bf16 MXU matmul -> [n, 128].
    x = x_ref[...].astype(jnp.bfloat16)
    s = jnp.dot(x, wscore_ref[...], preferred_element_type=jnp.float32)

    # Numerical stabilization: subtract the per-row global max.  It is a
    # constant shift within every head's segment, so the per-head softmax is
    # exact (padded columns are harmless: they hit all-zero rows of rhs).
    s = s - jnp.max(s, axis=-1, keepdims=True)
    e = jnp.exp(s)                                           # f32, EUP

    # ONE fused MXU matmul: left half = unnormalized attention output,
    # right half = per-head softmax denominator broadcast over that head's
    # output columns.  Both halves are 128-lane aligned slices.
    fused = jnp.dot(e.astype(jnp.bfloat16), rhs_ref[...],
                    preferred_element_type=jnp.float32)      # [n, 2U]
    unnorm = fused[:, :num_units]
    denom = fused[:, num_units:]

    # Normalize with the EUP approximate reciprocal; full-width unmasked store.
    o_ref[...] = unnorm * pl.reciprocal(denom, approx=True)


# ------------------------------- Pallas wrapper --------------------------------
def stl_forward(inputs, params, *, tile_n=None):
    """inputs: [N, d_q]  ->  style embedding [N, 1, token_embedding_size]."""
    N, d_q = inputs.shape
    wscore = params["wscore_p"]            # [d_q, 128] bf16
    rhs = params["rhs"]                    # [128, 2U]  bf16
    U = rhs.shape[1] // 2
    kernel = functools.partial(stl_fused_kernel, num_units=U)

    cost = pl.CostEstimate(
        flops=2 * N * d_q * wscore.shape[1] + 2 * N * rhs.shape[0] * rhs.shape[1],
        transcendentals=N * wscore.shape[1] + N * U,
        bytes_accessed=int(inputs.size * 4 + wscore.size * 2 + rhs.size * 2 + N * U * 4),
    )

    if tile_n is None or N <= tile_n:
        # Tiny-batch path (e.g. N=2): one grid-less, fully VMEM-resident call.
        out = pl.pallas_call(
            kernel,
            out_shape=jax.ShapeDtypeStruct((N, U), jnp.float32),
            in_specs=[VMEM_SPEC, VMEM_SPEC, VMEM_SPEC],
            out_specs=VMEM_SPEC,
            cost_estimate=cost,
        )(inputs, wscore, rhs)
        return out[:, None, :]             # torch returns [N, T_q=1, num_units]

    # Batched serving path: grid over N.  Constant index maps keep the weights
    # VMEM-resident (no per-step weight DMA); "parallel" lets v7x shard the
    # batch across its two TensorCores.
    n_pad = (-N) % tile_n
    x = jnp.pad(inputs, ((0, n_pad), (0, 0))) if n_pad else inputs
    n_padded = x.shape[0]
    out = pl.pallas_call(
        kernel,
        out_shape=jax.ShapeDtypeStruct((n_padded, U), jnp.float32),
        grid=(n_padded // tile_n,),
        in_specs=[
            pl.BlockSpec((tile_n, d_q), lambda i: (i, 0)),
            pl.BlockSpec(wscore.shape, lambda i: (0, 0)),
            pl.BlockSpec(rhs.shape, lambda i: (0, 0)),
        ],
        out_specs=pl.BlockSpec((tile_n, U), lambda i: (i, 0)),
        compiler_params=pltpu.CompilerParams(dimension_semantics=("parallel",)),
        cost_estimate=cost,
    )(x, wscore, rhs)
    return out[:N, None, :]


# ------------------------------ parameter setup --------------------------------
def init_params(hp, key):
    d_q = hp.ref_enc_gru_size
    U = hp.token_embedding_size
    H = hp.num_heads
    d_k = U // H
    u = U // H
    Tk = hp.token_num
    hi = jax.lax.Precision.HIGHEST

    k_embed, k_q, k_k, k_v = jax.random.split(key, 4)

    # torch: init.normal_(embed, mean=0, std=0.5)
    embed = 0.5 * jax.random.normal(k_embed, (Tk, d_k), jnp.float32)
    # nn.Linear(in, out, bias=False): kept in transposed GEMM layout [in, out].
    wq = jax.random.uniform(k_q, (d_q, U), jnp.float32, -1.0, 1.0) / (d_q ** 0.5)
    wk = jax.random.uniform(k_k, (d_k, U), jnp.float32, -1.0, 1.0) / (d_k ** 0.5)
    wv = jax.random.uniform(k_v, (d_k, U), jnp.float32, -1.0, 1.0) / (d_k ** 0.5)

    # ---------- parameter-only precompute (hoisted out of the hot path) --------
    keys = jnp.tanh(embed)                                   # [Tk, d_k]
    kproj = jnp.matmul(keys, wk, precision=hi)               # [Tk, U]
    vproj = jnp.matmul(keys, wv, precision=hi)               # [Tk, U]

    # Block-diagonal per-head key / value matrices.
    #   kprime[h*u + c, h*Tk + t] = kproj[t, h*u + c]
    #   vprime[h*Tk + t, h*u + c] = vproj[t, h*u + c]
    HTk = H * Tk
    kprime = jnp.zeros((U, HTk), jnp.float32)
    vprime = jnp.zeros((HTk, U), jnp.float32)
    for h in range(H):
        kprime = kprime.at[h * u:(h + 1) * u, h * Tk:(h + 1) * Tk].set(
            kproj[:, h * u:(h + 1) * u].T)
        vprime = vprime.at[h * Tk:(h + 1) * Tk, h * u:(h + 1) * u].set(
            vproj[:, h * u:(h + 1) * u])

    # Fold the query projection and the 1/sqrt(d_k) scale into one score matrix.
    wscore = jnp.matmul(wq, kprime, precision=hi) / (d_k ** 0.5)     # [d_q, HTk]

    # Per-head segment-sum matrix mapping each head's Tk rows onto that head's
    # u output columns: (e @ seg_u)[:, h*u + c] = per-head softmax denominator.
    seg_u = jnp.kron(jnp.eye(H, dtype=jnp.float32), jnp.ones((Tk, u), jnp.float32))

    # Lane-align HTk = 80 -> 128 with zeros (exact for the fused formulation)
    # and store the MXU operands in bf16 (f32 accumulation in the kernel).
    pad_k = (-HTk) % 128
    wscore_p = jnp.pad(wscore, ((0, 0), (0, pad_k))).astype(jnp.bfloat16)
    rhs = jnp.pad(jnp.concatenate([vprime, seg_u], axis=1),
                  ((0, pad_k), (0, 0))).astype(jnp.bfloat16)          # [128, 2U]

    return {
        "wscore_p": wscore_p, "rhs": rhs,                   # kernel operands
        "embed": embed, "wq": wq, "wk": wk, "wv": wv,       # raw params (reference)
    }


# --------------------------- plain-JAX reference (torch) -----------------------
def stl_reference(inputs, params, hp):
    """Direct mirror of STL.forward + MultiHeadAttention.forward (f32)."""
    N = inputs.shape[0]
    H = hp.num_heads
    U = hp.token_embedding_size
    d_k = U // H
    hi = jax.lax.Precision.HIGHEST

    query = inputs[:, None, :]                                        # [N, 1, d_q]
    keys = jnp.broadcast_to(jnp.tanh(params["embed"])[None],
                            (N, hp.token_num, d_k))                   # [N, Tk, d_k]
    querys = jnp.matmul(query, params["wq"], precision=hi)            # [N, 1, U]
    keys_p = jnp.matmul(keys, params["wk"], precision=hi)             # [N, Tk, U]
    values = jnp.matmul(keys, params["wv"], precision=hi)             # [N, Tk, U]

    def split_heads(x):                                               # -> [H, N, T, U//H]
        return jnp.stack(jnp.split(x, H, axis=2), axis=0)

    q, k, v = split_heads(querys), split_heads(keys_p), split_heads(values)
    scores = jnp.matmul(q, jnp.swapaxes(k, 2, 3), precision=hi) / (d_k ** 0.5)
    scores = jax.nn.softmax(scores, axis=3)
    out = jnp.matmul(scores, v, precision=hi)                         # [H, N, 1, U//H]
    out = jnp.concatenate(jnp.split(out, H, axis=0), axis=3)[0]       # [N, 1, U]
    return out


# ------------------------------------ main --------------------------------------
if __name__ == "__main__":
    hp = HP()
    N = 2

    root = jax.random.PRNGKey(0)
    k_in, k_par = jax.random.split(root)
    inputs = jax.random.normal(k_in, (N, hp.ref_enc_gru_size), jnp.float32)
    params = init_params(hp, k_par)

    # ---- tiny-batch path (module spec: N=2, single grid-less pallas_call) ----
    fwd = jax.jit(lambda x: stl_forward(x, params))
    style_embed = jax.block_until_ready(fwd(inputs))

    assert style_embed.shape == (N, 1, hp.token_embedding_size), style_embed.shape
    assert style_embed.dtype == jnp.float32
    assert bool(jnp.all(jnp.isfinite(style_embed)))

    ref = stl_reference(inputs, params, hp)
    max_err = float(jnp.max(jnp.abs(style_embed - ref)))
    assert max_err < 1e-2, f"mismatch vs reference: {max_err}"

    # ---- batched serving path (grid over N, parallel dimension semantics) ----
    Nb = 256
    xb = jax.random.normal(jax.random.PRNGKey(1), (Nb, hp.ref_enc_gru_size),
                           jnp.float32)
    fwd_b = jax.jit(lambda x: stl_forward(x, params, tile_n=128))
    yb = jax.block_until_ready(fwd_b(xb))
    assert yb.shape == (Nb, 1, hp.token_embedding_size)
    refb = stl_reference(xb, params, hp)
    max_err_b = float(jnp.max(jnp.abs(yb - refb)))
    assert max_err_b < 1e-2, f"batched mismatch vs reference: {max_err_b}"

    print("KERNEL_OK")
</pallas_src>

<mosaic_0001>
module attributes {stable_mosaic.version = 11 : i64} {
  func.func @stl_fused_kernel(%arg0: memref<2x128xf32, #tpu.memory_space<vmem>>, %arg1: memref<128x128xbf16, #tpu.memory_space<vmem>>, %arg2: memref<128x512xbf16, #tpu.memory_space<vmem>>, %arg3: memref<2x256xf32, #tpu.memory_space<vmem>>) attributes {dimension_semantics = [], scalar_prefetch = 0 : i64, scratch_operands = 0 : i64, tpu.core_type = #tpu.core_type<tc>} {
    %c0 = arith.constant 0 : index
    %c0_0 = arith.constant 0 : index
    %0 = vector.load %arg0[%c0, %c0_0] : memref<2x128xf32, #tpu.memory_space<vmem>>, vector<2x128xf32>
    %1 = arith.truncf %0 : vector<2x128xf32> to vector<2x128xbf16>
    %c0_1 = arith.constant 0 : index
    %c0_2 = arith.constant 0 : index
    %2 = vector.load %arg1[%c0_1, %c0_2] : memref<128x128xbf16, #tpu.memory_space<vmem>>, vector<128x128xbf16>
    %cst = arith.constant dense<0.000000e+00> : vector<2x128xf32>
    %3 = tpu.matmul %1, %2, %cst {dimension_numbers = #tpu.dot_dimension_numbers<[1], [0], [0], [1], [0, 0, 1, 1], [], []>} : vector<2x128xbf16>, vector<128x128xbf16>, vector<2x128xf32> -> vector<2x128xf32>
    %cst_3 = arith.constant dense<0xFF800000> : vector<2xf32>
    %4 = vector.multi_reduction <maximumf>, %3, %cst_3 [1] : vector<2x128xf32> to vector<2xf32>
    %5 = vector.shape_cast %4 : vector<2xf32> to vector<2x1xf32>
    %6 = vector.broadcast %5 : vector<2x1xf32> to vector<2x128xf32>
    %7 = arith.subf %3, %6 : vector<2x128xf32>
    %8 = math.exp %7 : vector<2x128xf32>
    %9 = arith.truncf %8 : vector<2x128xf32> to vector<2x128xbf16>
    %c0_4 = arith.constant 0 : index
    %c0_5 = arith.constant 0 : index
    %10 = vector.load %arg2[%c0_4, %c0_5] : memref<128x512xbf16, #tpu.memory_space<vmem>>, vector<128x512xbf16>
    %cst_6 = arith.constant dense<0.000000e+00> : vector<2x512xf32>
    %11 = tpu.matmul %9, %10, %cst_6 {dimension_numbers = #tpu.dot_dimension_numbers<[1], [0], [0], [1], [0, 0, 1, 1], [], []>} : vector<2x128xbf16>, vector<128x512xbf16>, vector<2x512xf32> -> vector<2x512xf32>
    %12 = vector.extract_strided_slice %11 {offsets = [0, 0], sizes = [2, 256], strides = [1, 1]} : vector<2x512xf32> to vector<2x256xf32>
    %13 = vector.extract_strided_slice %11 {offsets = [0, 256], sizes = [2, 256], strides = [1, 1]} : vector<2x512xf32> to vector<2x256xf32>
    %14 = tpu.reciprocal %13 {approx = true} : vector<2x256xf32> -> vector<2x256xf32>
    %15 = arith.mulf %12, %14 : vector<2x256xf32>
    %c0_7 = arith.constant 0 : index
    %c0_8 = arith.constant 0 : index
    %16 = vector.load %arg3[%c0_7, %c0_8] : memref<2x256xf32, #tpu.memory_space<vmem>>, vector<2x256xf32>
    tpu.vector_store %arg3[%c0_7, %c0_8], %15 {strides = array<i32>} : memref<2x256xf32, #tpu.memory_space<vmem>>, vector<2x256xf32>,
    return
  }
}

</mosaic_0001>

<llo_original>
// kernel: _lambda_.1
$region0: #{_lambda_.1}
  #allocation0 [shape = 'u32[]', space=smem, size = 0x4, offset = 0x4, fixed_abs, tag = 'smem constant byte address 0x4 - core index']
  #allocation1 [shape = 'u32[72,128]{1,0:T(1,128)}', space=vmem, size = 0x9000, scoped, tag = 'internal scratch']
  %s0 = inlined_call_operand.hbm [shape: f32[2,128], index: 0, kind: input, shape index: {}]
  %s1 = inlined_call_operand.hbm [shape: bf16[128,128], index: 1, kind: input, shape index: {}]
  %s2 = inlined_call_operand.hbm [shape: bf16[128,512], index: 2, kind: input, shape index: {}]
  %s3 = inlined_call_operand.vmem [shape: f32[2,256], index: 3, kind: output, shape index: {}]
  %s4 = sld [smem:[#allocation0]]
  $region34: #{_lambda_.1} parent=0
    _
  %s6 = ssub.s32 1, %s4
  %s7 = scalar_select 0, %s6, %s4
  $region1: #{_lambda_.1} parent=0
    #allocation2 [shape = 'u8[1024]{0}', space=vmem, size = 0x400, scoped, tag = 'input window, operand 0, single buffered']
    #allocation3 [shape = 's32[1]{0}', space=sflag, size = 0x4, scoped, tag = 'scoped memory for _lambda_.1']
    #allocation4 [shape = 'u8[32768]{0}', space=vmem, size = 0x8000, scoped, tag = 'input window, operand 1, single buffered']
    #allocation5 [shape = 's32[1]{0}', space=sflag, size = 0x4, scoped, tag = 'scoped memory for _lambda_.1']
    #allocation6 [shape = 'u8[131072]{0}', space=vmem, size = 0x20000, scoped, tag = 'input window, operand 2, single buffered']
    %8 = vsyncpa [#allocation3], 0
    %9 = vsyncpa [#allocation5], 0
    // Predicated region
    $region2: #{_lambda_.1} parent=1 // pred_check
      _
    $region3: #{_lambda_.1} parent=1 // pred_check_branch
      %11 = sbr.rel (0) target = $region5
    $region4: #{_lambda_.1} parent=1 // pred_region
      %13 = vsyncadd [#allocation3], 0
      %s15 = sshll.u32 %s0, 4
      %s16 = int_to_ptr.hbm [resolvable:$true] %s15
      %s17 = sshll.u32 [#allocation2], 4
      %s18 = int_to_ptr.vmem [resolvable:$true] %s17
      %20 = dma.hbm_to_vmem [thread:$0]  %s16, 32, %s18, [#allocation3]
    $region5: #{_lambda_.1} parent=1 // pred_fallthru
      _
    // Predicated region
    $region6: #{_lambda_.1} parent=1 // pred_check
      _
    $region7: #{_lambda_.1} parent=1 // pred_check_branch
      %22 = sbr.rel (0) target = $region9
    $region8: #{_lambda_.1} parent=1 // pred_region
      %24 = vsyncadd [#allocation5], 0
      %s25 = sshll.u32 %s1, 4
      %s26 = int_to_ptr.hbm [resolvable:$true] %s25
      %s27 = sshll.u32 [#allocation4], 4
      %s28 = int_to_ptr.vmem [resolvable:$true] %s27
      %33 = dma.hbm_to_vmem [thread:$0]  %s26, 1024, %s28, [#allocation5], 64, 64, 4
    $region9: #{_lambda_.1} parent=1 // pred_fallthru
      _
    // Predicated region
    $region10: #{_lambda_.1} parent=1 // pred_check
      _
    $region11: #{_lambda_.1} parent=1 // pred_check_branch
      %35 = sbr.rel (0) target = $region13
    $region12: #{_lambda_.1} parent=1 // pred_region
      %37 = vsyncadd [#allocation5], 0
      %s38 = sshll.u32 %s2, 4
      %s39 = int_to_ptr.hbm [resolvable:$true] %s38
      %s40 = sshll.u32 [#allocation6], 4
      %s41 = int_to_ptr.vmem [resolvable:$true] %s40
      %46 = dma.hbm_to_vmem [thread:$0]  %s39, 4096, %s41, [#allocation5], 256, 256, 16
    $region13: #{_lambda_.1} parent=1 // pred_fallthru
      _
    // Predicated region
    $region14: #{_lambda_.1} parent=1 // pred_check
      _
    $region15: #{_lambda_.1} parent=1 // pred_check_branch
      %48 = sbr.rel (0) target = $region17
    $region16: #{_lambda_.1} parent=1 // pred_region
      %50 = dma.done [#allocation3], 32
    $region17: #{_lambda_.1} parent=1 // pred_fallthru
      _
    // Predicated region
    $region18: #{_lambda_.1} parent=1 // pred_check
      _
    $region19: #{_lambda_.1} parent=1 // pred_check_branch
      %52 = sbr.rel (0) target = $region21
    $region20: #{_lambda_.1} parent=1 // pred_region
      %54 = dma.done [#allocation5], 1024
    $region21: #{_lambda_.1} parent=1 // pred_fallthru
      _
    // Predicated region
    $region22: #{_lambda_.1} parent=1 // pred_check
      _
    $region23: #{_lambda_.1} parent=1 // pred_check_branch
      %56 = sbr.rel (0) target = $region25
    $region24: #{_lambda_.1} parent=1 // pred_region
      %58 = dma.done [#allocation5], 4096
    $region25: #{_lambda_.1} parent=1 // pred_fallthru
      _
    %v59 = vld [vmem:[#allocation2] sm:$0x3]
    %v60 = vpack.c.bf16 %v59, %v59
    %v61 = vld [vmem:[#allocation4] sm:$0xf]
    %v62 = vld [vmem:[#allocation4 + $0x4] sm:$0xf]
    %v63 = vld [vmem:[#allocation4 + $0x8] sm:$0xf]
    %v64 = vld [vmem:[#allocation4 + $0xc] sm:$0xf]
    %v65 = vld [vmem:[#allocation4 + $0x10] sm:$0xf]
    %v66 = vld [vmem:[#allocation4 + $0x14] sm:$0xf]
    %v67 = vld [vmem:[#allocation4 + $0x18] sm:$0xf]
    %v68 = vld [vmem:[#allocation4 + $0x1c] sm:$0xf]
    %v69 = vld [vmem:[#allocation4 + $0x20] sm:$0xf]
    %v70 = vld [vmem:[#allocation4 + $0x24] sm:$0xf]
    %v71 = vld [vmem:[#allocation4 + $0x28] sm:$0xf]
    %v72 = vld [vmem:[#allocation4 + $0x2c] sm:$0xf]
    %v73 = vld [vmem:[#allocation4 + $0x30] sm:$0xf]
    %v74 = vld [vmem:[#allocation4 + $0x34] sm:$0xf]
    %v75 = vld [vmem:[#allocation4 + $0x38] sm:$0xf]
    %v76 = vld [vmem:[#allocation4 + $0x3c] sm:$0xf]
    %v93 = vunpack.c.l.b16 %v61
    %v94 = vunpack.c.l.b16 %v62
    %v95 = vunpack.c.l.b16 %v63
    %v96 = vunpack.c.l.b16 %v64
    %v97 = vunpack.c.l.b16 %v65
    %v98 = vunpack.c.l.b16 %v66
    %v99 = vunpack.c.l.b16 %v67
    %v100 = vunpack.c.l.b16 %v68
    %v101 = vunpack.c.l.b16 %v69
    %v102 = vunpack.c.l.b16 %v70
    %v103 = vunpack.c.l.b16 %v71
    %v104 = vunpack.c.l.b16 %v72
    %v105 = vunpack.c.l.b16 %v73
    %v106 = vunpack.c.l.b16 %v74
    %v107 = vunpack.c.l.b16 %v75
    %v108 = vunpack.c.l.b16 %v76
    %v109 = vpack.c.b16 %v94, %v93
    %v110 = vpack.c.b16 %v96, %v95
    %v111 = vpack.c.b16 %v98, %v97
    %v112 = vpack.c.b16 %v100, %v99
    %v113 = vpack.c.b16 %v102, %v101
    %v114 = vpack.c.b16 %v104, %v103
    %v115 = vpack.c.b16 %v106, %v105
    %v116 = vpack.c.b16 %v108, %v107
    %125 = vmatpush.bf16.msra.mxu0 %v116
    %126 = vmatpush.bf16.msra.mxu0 %v115
    %127 = vmatpush.bf16.msra.mxu0 %v114
    %128 = vmatpush.bf16.msra.mxu0 %v113
    %129 = vmatpush.bf16.msra.mxu0 %v112
    %130 = vmatpush.bf16.msra.mxu0 %v111
    %131 = vmatpush.bf16.msra.mxu0 %v110
    %132 = vmatpush.bf16.msra.mxu0 %v109
    %133 = vmatmul.bf16.gmra.mxu0 %v60
    %v134 = vpop.f32.mrf.mxu0
    %v135 = vadd.f32 0.0, %v134
    %v136 = vpop.f32.mrf.mxu0
    %137 = vdwg.mxu0
    %vm138 = vcmask 1041408
    %v139 = vsel %vm138, %v135, -inf
    %140 = vmax.xlane.f32.xlu0 %v139
    %v141 = vpop.xlane.xlu0 %140
    %v142 = vsub.f32 %v135, %v141
    %v143 = vmul.f32 %v142, 1.442695
    %v144 = vpow.pop %v143
    %v145 = vpack.c.bf16 %v144, %v144
    %v146 = vld [vmem:[#allocation6] sm:$0xff]
    %v147 = vld [vmem:[#allocation6 + $0x8] sm:$0xff]
    %v148 = vld [vmem:[#allocation6 + $0x10] sm:$0xff]
    %v149 = vld [vmem:[#allocation6 + $0x18] sm:$0xff]
    %v150 = vld [vmem:[#allocation6 + $0x20] sm:$0xff]
    %v151 = vld [vmem:[#allocation6 + $0x28] sm:$0xff]
    %v152 = vld [vmem:[#allocation6 + $0x30] sm:$0xff]
    %v153 = vld [vmem:[#allocation6 + $0x38] sm:$0xff]
    %v154 = vld [vmem:[#allocation6 + $0x40] sm:$0xff]
    %v155 = vld [vmem:[#allocation6 + $0x48] sm:$0xff]
    %v156 = vld [vmem:[#allocation6 + $0x50] sm:$0xff]
    %v157 = vld [vmem:[#allocation6 + $0x58] sm:$0xff]
    %v158 = vld [vmem:[#allocation6 + $0x60] sm:$0xff]
    %v159 = vld [vmem:[#allocation6 + $0x68] sm:$0xff]
    %v160 = vld [vmem:[#allocation6 + $0x70] sm:$0xff]
    %v161 = vld [vmem:[#allocation6 + $0x78] sm:$0xff]
    %v162 = vld [vmem:[#allocation6 + $0x80] sm:$0xff]
    %v163 = vld [vmem:[#allocation6 + $0x88] sm:$0xff]
    %v164 = vld [vmem:[#allocation6 + $0x90] sm:$0xff]
    %v165 = vld [vmem:[#allocation6 + $0x98] sm:$0xff]
    %v166 = vld [vmem:[#allocation6 + $0xa0] sm:$0xff]
    %v167 = vld [vmem:[#allocation6 + $0xa8] sm:$0xff]
    %v168 = vld [vmem:[#allocation6 + $0xb0] sm:$0xff]
    %v169 = vld [vmem:[#allocation6 + $0xb8] sm:$0xff]
    %v170 = vld [vmem:[#allocation6 + $0xc0] sm:$0xff]
    %v171 = vld [vmem:[#allocation6 + $0xc8] sm:$0xff]
    %v172 = vld [vmem:[#allocation6 + $0xd0] sm:$0xff]
    %v173 = vld [vmem:[#allocation6 + $0xd8] sm:$0xff]
    %v174 = vld [vmem:[#allocation6 + $0xe0] sm:$0xff]
    %v175 = vld [vmem:[#allocation6 + $0xe8] sm:$0xff]
    %v176 = vld [vmem:[#allocation6 + $0xf0] sm:$0xff]
    %v177 = vld [vmem:[#allocation6 + $0xf8] sm:$0xff]
    %v210 = vunpack.c.l.b16 %v146
    %v211 = vunpack.c.h.b16 %v146
    %v212 = vunpack.c.l.b16 %v147
    %v213 = vunpack.c.h.b16 %v147
    %v214 = vunpack.c.l.b16 %v148
    %v215 = vunpack.c.h.b16 %v148
    %v216 = vunpack.c.l.b16 %v149
    %v217 = vunpack.c.h.b16 %v149
    %v218 = vunpack.c.l.b16 %v150
    %v219 = vunpack.c.h.b16 %v150
    %v220 = vunpack.c.l.b16 %v151
    %v221 = vunpack.c.h.b16 %v151
    %v222 = vunpack.c.l.b16 %v152
    %v223 = vunpack.c.h.b16 %v152
    %v224 = vunpack.c.l.b16 %v153
    %v225 = vunpack.c.h.b16 %v153
    %v226 = vunpack.c.l.b16 %v154
    %v227 = vunpack.c.h.b16 %v154
    %v228 = vunpack.c.l.b16 %v155
    %v229 = vunpack.c.h.b16 %v155
    %v230 = vunpack.c.l.b16 %v156
    %v231 = vunpack.c.h.b16 %v156
    %v232 = vunpack.c.l.b16 %v157
    %v233 = vunpack.c.h.b16 %v157
    %v234 = vunpack.c.l.b16 %v158
    %v235 = vunpack.c.h.b16 %v158
    %v236 = vunpack.c.l.b16 %v159
    %v237 = vunpack.c.h.b16 %v159
    %v238 = vunpack.c.l.b16 %v160
    %v239 = vunpack.c.h.b16 %v160
    %v240 = vunpack.c.l.b16 %v161
    %v241 = vunpack.c.h.b16 %v161
    %v242 = vunpack.c.l.b16 %v162
    %v243 = vunpack.c.h.b16 %v162
    %v244 = vunpack.c.l.b16 %v163
    %v245 = vunpack.c.h.b16 %v163
    %v246 = vunpack.c.l.b16 %v164
    %v247 = vunpack.c.h.b16 %v164
    %v248 = vunpack.c.l.b16 %v165
    %v249 = vunpack.c.h.b16 %v165
    %v250 = vunpack.c.l.b16 %v166
    %v251 = vunpack.c.h.b16 %v166
    %v252 = vunpack.c.l.b16 %v167
    %v253 = vunpack.c.h.b16 %v167
    %v254 = vunpack.c.l.b16 %v168
    %v255 = vunpack.c.h.b16 %v168
    %v256 = vunpack.c.l.b16 %v169
    %v257 = vunpack.c.h.b16 %v169
    %v258 = vunpack.c.l.b16 %v170
    %v259 = vunpack.c.h.b16 %v170
    %v260 = vunpack.c.l.b16 %v171
    %v261 = vunpack.c.h.b16 %v171
    %v262 = vunpack.c.l.b16 %v172
    %v263 = vunpack.c.h.b16 %v172
    %v264 = vunpack.c.l.b16 %v173
    %v265 = vunpack.c.h.b16 %v173
    %v266 = vunpack.c.l.b16 %v174
    %v267 = vunpack.c.h.b16 %v174
    %v268 = vunpack.c.l.b16 %v175
    %v269 = vunpack.c.h.b16 %v175
    %v270 = vunpack.c.l.b16 %v176
    %v271 = vunpack.c.h.b16 %v176
    %v272 = vunpack.c.l.b16 %v177
    %v273 = vunpack.c.h.b16 %v177
    %v274 = vpack.c.b16 %v214, %v210
    %v275 = vpack.c.b16 %v215, %v211
    %v276 = vpack.c.b16 %v216, %v212
    %v277 = vpack.c.b16 %v217, %v213
    %v278 = vpack.c.b16 %v222, %v218
    %v279 = vpack.c.b16 %v223, %v219
    %v280 = vpack.c.b16 %v224, %v220
    %v281 = vpack.c.b16 %v225, %v221
    %v282 = vpack.c.b16 %v230, %v226
    %v283 = vpack.c.b16 %v231, %v227
    %v284 = vpack.c.b16 %v232, %v228
    %v285 = vpack.c.b16 %v233, %v229
    %v286 = vpack.c.b16 %v238, %v234
    %v287 = vpack.c.b16 %v239, %v235
    %v288 = vpack.c.b16 %v240, %v236
    %v289 = vpack.c.b16 %v241, %v237
    %v290 = vpack.c.b16 %v246, %v242
    %v291 = vpack.c.b16 %v247, %v243
    %v292 = vpack.c.b16 %v248, %v244
    %v293 = vpack.c.b16 %v249, %v245
    %v294 = vpack.c.b16 %v254, %v250
    %v295 = vpack.c.b16 %v255, %v251
    %v296 = vpack.c.b16 %v256, %v252
    %v297 = vpack.c.b16 %v257, %v253
    %v298 = vpack.c.b16 %v262, %v258
    %v299 = vpack.c.b16 %v263, %v259
    %v300 = vpack.c.b16 %v264, %v260
    %v301 = vpack.c.b16 %v265, %v261
    %v302 = vpack.c.b16 %v270, %v266
    %v303 = vpack.c.b16 %v271, %v267
    %v304 = vpack.c.b16 %v272, %v268
    %v305 = vpack.c.b16 %v273, %v269
    %338 = vmatpush.bf16.msra.mxu0 %v302
    %339 = vmatpush.bf16.msra.mxu0 %v298
    %340 = vmatpush.bf16.msra.mxu0 %v294
    %341 = vmatpush.bf16.msra.mxu0 %v290
    %342 = vmatpush.bf16.msra.mxu0 %v286
    %343 = vmatpush.bf16.msra.mxu0 %v282
    %344 = vmatpush.bf16.msra.mxu0 %v278
    %345 = vmatpush.bf16.msra.mxu0 %v274
    %346 = vmatmul.bf16.gmra.mxu0 %v145
    %v347 = vpop.f32.mrf.mxu0
    %v348 = vadd.f32 0.0, %v347
    %v349 = vpop.f32.mrf.mxu0
    %350 = vdwg.mxu0
    %351 = vmatpush.bf16.msra.mxu0 %v303
    %352 = vmatpush.bf16.msra.mxu0 %v299
    %353 = vmatpush.bf16.msra.mxu0 %v295
    %354 = vmatpush.bf16.msra.mxu0 %v291
    %355 = vmatpush.bf16.msra.mxu0 %v287
    %356 = vmatpush.bf16.msra.mxu0 %v283
    %357 = vmatpush.bf16.msra.mxu0 %v279
    %358 = vmatpush.bf16.msra.mxu0 %v275
    %359 = vmatmul.bf16.gmra.mxu0 %v145
    %v360 = vpop.f32.mrf.mxu0
    %v361 = vadd.f32 0.0, %v360
    %v362 = vpop.f32.mrf.mxu0
    %363 = vdwg.mxu0
    %364 = vmatpush.bf16.msra.mxu0 %v304
    %365 = vmatpush.bf16.msra.mxu0 %v300
    %366 = vmatpush.bf16.msra.mxu0 %v296
    %367 = vmatpush.bf16.msra.mxu0 %v292
    %368 = vmatpush.bf16.msra.mxu0 %v288
    %369 = vmatpush.bf16.msra.mxu0 %v284
    %370 = vmatpush.bf16.msra.mxu0 %v280
    %371 = vmatpush.bf16.msra.mxu0 %v276
    %372 = vmatmul.bf16.gmra.mxu0 %v145
    %v373 = vpop.f32.mrf.mxu0
    %v374 = vadd.f32 0.0, %v373
    %v375 = vpop.f32.mrf.mxu0
    %376 = vdwg.mxu0
    %377 = vmatpush.bf16.msra.mxu0 %v305
    %378 = vmatpush.bf16.msra.mxu0 %v301
    %379 = vmatpush.bf16.msra.mxu0 %v297
    %380 = vmatpush.bf16.msra.mxu0 %v293
    %381 = vmatpush.bf16.msra.mxu0 %v289
    %382 = vmatpush.bf16.msra.mxu0 %v285
    %383 = vmatpush.bf16.msra.mxu0 %v281
    %384 = vmatpush.bf16.msra.mxu0 %v277
    %385 = vmatmul.bf16.gmra.mxu0 %v145
    %v386 = vpop.f32.mrf.mxu0
    %v387 = vadd.f32 0.0, %v386
    %v388 = vpop.f32.mrf.mxu0
    %389 = vdwg.mxu0
    %v390 = vrcp.pop %v374
    %v391 = vrcp.pop %v387
    %v392 = vmul.f32 %v348, %v390
    %v393 = vmul.f32 %v361, %v391
    %v396 = vrot.slane %v393, 6
    %v397 = vsel %vm138, %v392, %v396
    %399 = vst [vmem:[%s3] sm:$0xf] %v397
    // Predicated region
    $region26: #{_lambda_.1} parent=1 // pred_check
      _
    $region27: #{_lambda_.1} parent=1 // pred_check_branch
      %401 = sbr.rel (0) target = $region29
    $region28: #{_lambda_.1} parent=1 // pred_region
      _
    $region29: #{_lambda_.1} parent=1 // pred_fallthru
      _
    // Predicated region
    $region30: #{_lambda_.1} parent=1 // pred_check
      _
    $region31: #{_lambda_.1} parent=1 // pred_check_branch
      %403 = sbr.rel (0) target = $region33
    $region32: #{_lambda_.1} parent=1 // pred_region
      _
    $region33: #{_lambda_.1} parent=1 // pred_fallthru
      _
    %404 = vsyncpa [#allocation3], 1
    %405 = vsyncpa [#allocation5], 1

</llo_original>
